<compile_context>
chip_gen: v7x
topology: tpu7x:2x2x1
jax: 0.10.0
libtpu: 0.0.40
codegen_flags: <defaults>
</compile_context>

<pallas_src>
import functools

import jax
import jax.numpy as jnp
from jax.experimental import pallas as pl
from jax.experimental.pallas import tpu as pltpu

_LANE = 128
_SUBLANE = 8


def _round_up(n, m):
    return ((n + m - 1) // m) * m


def _cdiv(a, b):
    return (a + b - 1) // b


# ---------------------------------------------------------------------------
# Kernel
# ---------------------------------------------------------------------------
def _bottleneck_kernel(x_ref, w1_ref, w2_ref, w3_ref, t_ref, o_ref, *, kb_p, d_p):
    """One batch tile of the whole fused block.

    x_ref:  [TB, d_p]   io dtype (padded features) — also the residual branch
    w*_ref: padded, BN-scale-folded, pre-transposed weights ([in, out]) in weight dtype
    t_ref:  [3, F_max]  f32 packed shifts (bias + BN fold), rows = layer 1/2/3
    """
    x_io = x_ref[...]
    wdt = w1_ref.dtype
    x_res = x_io.astype(jnp.float32)                 # residual kept in f32

    t1 = t_ref[0:1, :kb_p]
    t2 = t_ref[1:2, :kb_p]
    t3 = t_ref[2:3, :d_p]

    h = jnp.dot(x_io.astype(wdt), w1_ref[...], preferred_element_type=jnp.float32)
    h = jnp.maximum(h + t1, 0.0)                     # fc1 -> bn1 -> relu

    h = jnp.dot(h.astype(wdt), w2_ref[...], preferred_element_type=jnp.float32)
    h = jnp.maximum(h + t2, 0.0)                     # fc2 -> bn2 -> relu
    # TODO(synk): training-mode Dropout(0.2) omitted (eval semantics -> identity).

    h = jnp.dot(h.astype(wdt), w3_ref[...], preferred_element_type=jnp.float32)
    o_ref[...] = jnp.maximum(h + t3 + x_res, 0.0).astype(o_ref.dtype)  # fc3 -> bn3 -> +id -> relu


# ---------------------------------------------------------------------------
# One-time parameter preparation (hoisted out of the per-call path)
# ---------------------------------------------------------------------------
def prepare_params(params, weight_dtype=jnp.bfloat16, eps=1e-5):
    """Fold Linear bias + eval-mode BN into (weights, shift), transpose, pad, pack.

    bf16 weights by default (MXU-native on all generations); pass jnp.float32 for a
    full-precision debug path.  Accumulation is always f32 in the kernel.
    """
    def fold(p):
        w, b, g, be, m, v = p
        inv_std = g / jnp.sqrt(v + eps)              # per-output-feature scale
        w_folded = (w * inv_std[:, None]).T          # [in, out], BN scale folded in
        t = be + (b - m) * inv_std                   # per-output-feature shift
        return w_folded, t

    w1f, t1 = fold(params["fc1"])                    # [d, kb]
    w2f, t2 = fold(params["fc2"])                    # [kb, kb]
    w3f, t3 = fold(params["fc3"])                    # [kb, d]

    d = w1f.shape[0]
    kb = w1f.shape[1]
    d_p = _round_up(d, _LANE)
    kb_p = _round_up(kb, _LANE)
    f_max = max(d_p, kb_p)

    def pad2(a, rows, cols):
        return jnp.zeros((rows, cols), a.dtype).at[: a.shape[0], : a.shape[1]].set(a)

    w1p = pad2(w1f, d_p, kb_p).astype(weight_dtype)
    w2p = pad2(w2f, kb_p, kb_p).astype(weight_dtype)
    w3p = pad2(w3f, kb_p, d_p).astype(weight_dtype)

    t_packed = jnp.zeros((3, f_max), jnp.float32)
    t_packed = t_packed.at[0, :kb].set(t1.astype(jnp.float32))
    t_packed = t_packed.at[1, :kb].set(t2.astype(jnp.float32))
    t_packed = t_packed.at[2, :d].set(t3.astype(jnp.float32))

    return {"w1": w1p, "w2": w2p, "w3": w3p, "t": t_packed,
            "d": d, "kb": kb, "d_p": d_p, "kb_p": kb_p}


# ---------------------------------------------------------------------------
# Wrapper
# ---------------------------------------------------------------------------
def _vmem_cap_bytes():
    """Generation-aware VMEM cap with headroom (56 MiB fallback covers v7x's 64 MiB)."""
    try:
        cap = int(pltpu.get_tpu_info().vmem_capacity_bytes)
    except Exception:
        cap = 64 << 20
    return (cap * 7) // 8


def bottleneck_residual_block(x, prep, *, max_batch_tile=2048, io_dtype=jnp.float32):
    B, D = x.shape
    assert D == prep["d"], "input feature dim mismatch with prepared params"
    d_p, kb_p = prep["d_p"], prep["kb_p"]
    f_max = prep["t"].shape[1]

    io_itemsize = jnp.dtype(io_dtype).itemsize
    cap = _vmem_cap_bytes()
    weight_bytes = sum(int(a.size) * a.dtype.itemsize
                       for a in (prep["w1"], prep["w2"], prep["w3"], prep["t"]))
    # TODO(synk): for very large D/KB where resident weights approach the VMEM cap
    # (esp. v7x 64 MiB/TC), add a K/N reduction grid axis ("arbitrary", last in grid)
    # with an f32 VMEM accumulator instead of whole-weight residency.

    # ---- batch tiling: padding waste bounded by the 8-row sublane quantum per tile ----
    b_p = _round_up(B, _SUBLANE)
    io_budget = max(cap - 2 * weight_bytes - (2 << 20), 4 * _SUBLANE * d_p * io_itemsize)
    tb_vmem_max = io_budget // (4 * d_p * io_itemsize)        # x + out, double-buffered
    tb_cap = max(_SUBLANE, min(max_batch_tile, (tb_vmem_max // _SUBLANE) * _SUBLANE))
    n_tiles = _cdiv(b_p, tb_cap)
    tb = _round_up(_cdiv(b_p, n_tiles), _SUBLANE)
    b_pad = n_tiles * tb

    # ---- only materialize padding / casts when strictly needed ----
    need_pad = (b_pad != B) or (d_p != D)
    if need_pad:
        x_in = jnp.zeros((b_pad, d_p), io_dtype).at[:B, :D].set(x.astype(io_dtype))
    elif x.dtype != jnp.dtype(io_dtype):
        x_in = x.astype(io_dtype)
    else:
        x_in = x

    # ---- VMEM budget: no double counting; explicit limit always set, capped per-gen ----
    io_bytes = 2 * 2 * tb * d_p * io_itemsize          # x + out tiles, double-buffered
    needed = 2 * weight_bytes + io_bytes + (2 << 20)   # 2x weights covers the fallback path
    vmem_limit = int(min(cap, max(needed, 16 << 20)))

    kernel = functools.partial(_bottleneck_kernel, kb_p=kb_p, d_p=d_p)
    resident = lambda i: (0, 0)                        # weights/shifts: loaded once, stay in VMEM

    def build(single_buffer_weights):
        wmode = {"pipeline_mode": pl.Buffered(1)} if single_buffer_weights else {}
        return pl.pallas_call(
            kernel,
            out_shape=jax.ShapeDtypeStruct((b_pad, d_p), io_dtype),
            grid_spec=pltpu.PrefetchScalarGridSpec(
                num_scalar_prefetch=0,
                grid=(b_pad // tb,),
                in_specs=[
                    pl.BlockSpec((tb, d_p), lambda i: (i, 0)),      # x batch tile
                    pl.BlockSpec((d_p, kb_p), resident, **wmode),   # w1 (folded, transposed)
                    pl.BlockSpec((kb_p, kb_p), resident, **wmode),  # w2
                    pl.BlockSpec((kb_p, d_p), resident, **wmode),   # w3
                    pl.BlockSpec((3, f_max), resident, **wmode),    # packed shifts
                ],
                out_specs=pl.BlockSpec((tb, d_p), lambda i: (i, 0)),
            ),
            compiler_params=pltpu.CompilerParams(
                # TODO(synk): on v7x, consider pltpu.CORE_PARALLEL on this axis (or an
                # explicit per-core leading grid axis) to guarantee both TCs are used.
                dimension_semantics=("parallel",),
                vmem_limit_bytes=vmem_limit,
            ),
        )

    args = (x_in, prep["w1"], prep["w2"], prep["w3"], prep["t"])
    try:
        out = jax.block_until_ready(build(True)(*args))   # single-buffered resident weights
    except Exception:
        out = jax.block_until_ready(build(False)(*args))  # safe fallback: default buffering

    if need_pad:
        out = out[:B, :D]
    return out


# ---------------------------------------------------------------------------
# Reference + synthetic params
# ---------------------------------------------------------------------------
def _reference(x, params):
    """Plain-JAX reference for correctness checking (eval-mode module)."""
    def lin_bn(h, p, relu=True, eps=1e-5):
        w, b, g, be, m, v = p
        h = h @ w.T + b
        h = (h - m) / jnp.sqrt(v + eps) * g + be
        return jnp.maximum(h, 0.0) if relu else h

    out = lin_bn(x, params["fc1"])
    out = lin_bn(out, params["fc2"])
    out = lin_bn(out, params["fc3"], relu=False)
    return jnp.maximum(out + x, 0.0)


def make_params(key, input_dim, bottleneck_dim):
    """Deterministic synthetic parameters (PyTorch-like shapes)."""
    def layer(k, fan_in, fan_out):
        kw, kb, kg, kbe, km, kv = jax.random.split(k, 6)
        bound = 1.0 / jnp.sqrt(fan_in)
        w = jax.random.uniform(kw, (fan_out, fan_in), jnp.float32, -bound, bound)
        b = jax.random.uniform(kb, (fan_out,), jnp.float32, -bound, bound)
        gamma = 1.0 + 0.1 * jax.random.normal(kg, (fan_out,), jnp.float32)
        beta = 0.1 * jax.random.normal(kbe, (fan_out,), jnp.float32)
        rmean = 0.1 * jax.random.normal(km, (fan_out,), jnp.float32)
        rvar = 1.0 + 0.1 * jax.random.uniform(kv, (fan_out,), jnp.float32)
        return (w, b, gamma, beta, rmean, rvar)

    k1, k2, k3 = jax.random.split(key, 3)
    return {
        "fc1": layer(k1, input_dim, bottleneck_dim),
        "fc2": layer(k2, bottleneck_dim, bottleneck_dim),
        "fc3": layer(k3, bottleneck_dim, input_dim),
    }


if __name__ == "__main__":
    input_dim = 32
    bottleneck_dim = 16

    key = jax.random.PRNGKey(0)
    kx1, kx2, kp = jax.random.split(key, 3)
    params = make_params(kp, input_dim, bottleneck_dim)

    # Case 1: f32 weights + f32 I/O (precision/debug path), aligned batch -> tight tolerance.
    x1 = jax.random.normal(kx1, (8, input_dim), jnp.float32)
    ref1 = jax.block_until_ready(_reference(x1, params))
    prep_f32 = prepare_params(params, weight_dtype=jnp.float32)
    out1 = jax.block_until_ready(
        bottleneck_residual_block(x1, prep_f32, io_dtype=jnp.float32))
    assert out1.shape == x1.shape
    assert jnp.allclose(out1, ref1, atol=1e-5, rtol=1e-5), "f32 mismatch vs reference"

    # Case 2: default bf16 weights + bf16 activation I/O, ragged batch (exercises the
    # minimal-padding path) -> loose tolerance.
    x2 = jax.random.normal(kx2, (13, input_dim), jnp.float32)
    ref2 = jax.block_until_ready(_reference(x2, params))
    prep_bf16 = prepare_params(params)                       # bf16 weights by default
    out2 = jax.block_until_ready(
        bottleneck_residual_block(x2, prep_bf16, io_dtype=jnp.bfloat16))
    assert out2.shape == x2.shape
    assert jnp.allclose(out2.astype(jnp.float32), ref2, atol=1e-1, rtol=1e-1), \
        "bf16 mismatch vs reference"

    print("KERNEL_OK")
</pallas_src>

<mosaic_0001>
module attributes {stable_mosaic.version = 11 : i64} {
  func.func @_bottleneck_kernel(%arg0: i32, %arg1: memref<8x128xf32, #tpu.memory_space<vmem>>, %arg2: memref<128x128xf32, #tpu.memory_space<vmem>>, %arg3: memref<128x128xf32, #tpu.memory_space<vmem>>, %arg4: memref<128x128xf32, #tpu.memory_space<vmem>>, %arg5: memref<3x128xf32, #tpu.memory_space<vmem>>, %arg6: memref<8x128xf32, #tpu.memory_space<vmem>>) attributes {dimension_semantics = [#tpu.dimension_semantics<parallel>], iteration_bounds = array<i64: 1>, scalar_prefetch = 0 : i64, scratch_operands = 0 : i64, tpu.core_type = #tpu.core_type<tc>, window_params = [{transform_indices = @transform_0, window_bounds = array<i64: 8, 128>}, {pipeline_mode = #tpu.pipeline_mode<synchronous>, transform_indices = @transform_1, window_bounds = array<i64: 128, 128>}, {pipeline_mode = #tpu.pipeline_mode<synchronous>, transform_indices = @transform_2, window_bounds = array<i64: 128, 128>}, {pipeline_mode = #tpu.pipeline_mode<synchronous>, transform_indices = @transform_3, window_bounds = array<i64: 128, 128>}, {pipeline_mode = #tpu.pipeline_mode<synchronous>, transform_indices = @transform_4, window_bounds = array<i64: 3, 128>}, {transform_indices = @transform_5, window_bounds = array<i64: 8, 128>}]} {
    %c0 = arith.constant 0 : index
    %c0_0 = arith.constant 0 : index
    %0 = vector.load %arg1[%c0, %c0_0] : memref<8x128xf32, #tpu.memory_space<vmem>>, vector<8x128xf32>
    %c0_1 = arith.constant 0 : index
    %c0_2 = arith.constant 0 : index
    %1 = vector.load %arg5[%c0_1, %c0_2] : memref<3x128xf32, #tpu.memory_space<vmem>>, vector<1x128xf32>
    %c1 = arith.constant 1 : index
    %c0_3 = arith.constant 0 : index
    %2 = vector.load %arg5[%c1, %c0_3] : memref<3x128xf32, #tpu.memory_space<vmem>>, vector<1x128xf32>
    %c2 = arith.constant 2 : index
    %c0_4 = arith.constant 0 : index
    %3 = vector.load %arg5[%c2, %c0_4] : memref<3x128xf32, #tpu.memory_space<vmem>>, vector<1x128xf32>
    %c0_5 = arith.constant 0 : index
    %c0_6 = arith.constant 0 : index
    %4 = vector.load %arg2[%c0_5, %c0_6] : memref<128x128xf32, #tpu.memory_space<vmem>>, vector<128x128xf32>
    %cst = arith.constant dense<0.000000e+00> : vector<8x128xf32>
    %5 = tpu.matmul %0, %4, %cst {dimension_numbers = #tpu.dot_dimension_numbers<[1], [0], [0], [1], [0, 0, 1, 1], [], []>} : vector<8x128xf32>, vector<128x128xf32>, vector<8x128xf32> -> vector<8x128xf32>
    %6 = vector.broadcast %1 : vector<1x128xf32> to vector<8x128xf32>
    %7 = arith.addf %5, %6 : vector<8x128xf32>
    %cst_7 = arith.constant 0.000000e+00 : f32
    %8 = vector.broadcast %cst_7 : f32 to vector<8x128xf32>
    %9 = arith.maximumf %7, %8 : vector<8x128xf32>
    %c0_8 = arith.constant 0 : index
    %c0_9 = arith.constant 0 : index
    %10 = vector.load %arg3[%c0_8, %c0_9] : memref<128x128xf32, #tpu.memory_space<vmem>>, vector<128x128xf32>
    %cst_10 = arith.constant dense<0.000000e+00> : vector<8x128xf32>
    %11 = tpu.matmul %9, %10, %cst_10 {dimension_numbers = #tpu.dot_dimension_numbers<[1], [0], [0], [1], [0, 0, 1, 1], [], []>} : vector<8x128xf32>, vector<128x128xf32>, vector<8x128xf32> -> vector<8x128xf32>
    %12 = vector.broadcast %2 : vector<1x128xf32> to vector<8x128xf32>
    %13 = arith.addf %11, %12 : vector<8x128xf32>
    %cst_11 = arith.constant 0.000000e+00 : f32
    %14 = vector.broadcast %cst_11 : f32 to vector<8x128xf32>
    %15 = arith.maximumf %13, %14 : vector<8x128xf32>
    %c0_12 = arith.constant 0 : index
    %c0_13 = arith.constant 0 : index
    %16 = vector.load %arg4[%c0_12, %c0_13] : memref<128x128xf32, #tpu.memory_space<vmem>>, vector<128x128xf32>
    %cst_14 = arith.constant dense<0.000000e+00> : vector<8x128xf32>
    %17 = tpu.matmul %15, %16, %cst_14 {dimension_numbers = #tpu.dot_dimension_numbers<[1], [0], [0], [1], [0, 0, 1, 1], [], []>} : vector<8x128xf32>, vector<128x128xf32>, vector<8x128xf32> -> vector<8x128xf32>
    %18 = vector.broadcast %3 : vector<1x128xf32> to vector<8x128xf32>
    %19 = arith.addf %17, %18 : vector<8x128xf32>
    %20 = arith.addf %19, %0 : vector<8x128xf32>
    %cst_15 = arith.constant 0.000000e+00 : f32
    %21 = vector.broadcast %cst_15 : f32 to vector<8x128xf32>
    %22 = arith.maximumf %20, %21 : vector<8x128xf32>
    %c0_16 = arith.constant 0 : index
    %c0_17 = arith.constant 0 : index
    %23 = vector.load %arg6[%c0_16, %c0_17] : memref<8x128xf32, #tpu.memory_space<vmem>>, vector<8x128xf32>
    tpu.vector_store %arg6[%c0_16, %c0_17], %22 {strides = array<i32>} : memref<8x128xf32, #tpu.memory_space<vmem>>, vector<8x128xf32>,
    return
  }
  func.func @transform_0(%arg0: i32) -> (i32, i32) {
    %c0_i32 = arith.constant 0 : i32
    %c0_i32_0 = arith.constant 0 : i32
    return %arg0, %c0_i32 : i32, i32
  }
  func.func @transform_1(%arg0: i32) -> (i32, i32) {
    %c0_i32 = arith.constant 0 : i32
    %c0_i32_0 = arith.constant 0 : i32
    %c0_i32_1 = arith.constant 0 : i32
    return %c0_i32, %c0_i32_0 : i32, i32
  }
  func.func @transform_2(%arg0: i32) -> (i32, i32) {
    %c0_i32 = arith.constant 0 : i32
    %c0_i32_0 = arith.constant 0 : i32
    %c0_i32_1 = arith.constant 0 : i32
    return %c0_i32, %c0_i32_0 : i32, i32
  }
  func.func @transform_3(%arg0: i32) -> (i32, i32) {
    %c0_i32 = arith.constant 0 : i32
    %c0_i32_0 = arith.constant 0 : i32
    %c0_i32_1 = arith.constant 0 : i32
    return %c0_i32, %c0_i32_0 : i32, i32
  }
  func.func @transform_4(%arg0: i32) -> (i32, i32) {
    %c0_i32 = arith.constant 0 : i32
    %c0_i32_0 = arith.constant 0 : i32
    %c0_i32_1 = arith.constant 0 : i32
    return %c0_i32, %c0_i32_0 : i32, i32
  }
  func.func @transform_5(%arg0: i32) -> (i32, i32) {
    %c0_i32 = arith.constant 0 : i32
    %c0_i32_0 = arith.constant 0 : i32
    return %arg0, %c0_i32 : i32, i32
  }
}

module attributes {stable_mosaic.version = 11 : i64} {
  func.func @_bottleneck_kernel(%arg0: i32, %arg1: memref<8x128xf32, #tpu.memory_space<vmem>>, %arg2: memref<128x128xf32, #tpu.memory_space<vmem>>, %arg3: memref<128x128xf32, #tpu.memory_space<vmem>>, %arg4: memref<128x128xf32, #tpu.memory_space<vmem>>, %arg5: memref<3x128xf32, #tpu.memory_space<vmem>>, %arg6: memref<8x128xf32, #tpu.memory_space<vmem>>) attributes {dimension_semantics = [#tpu.dimension_semantics<parallel>], iteration_bounds = array<i64: 1>, scalar_prefetch = 0 : i64, scratch_operands = 0 : i64, tpu.core_type = #tpu.core_type<tc>, window_params = [{transform_indices = @transform_0, window_bounds = array<i64: 8, 128>}, {pipeline_mode = #tpu.pipeline_mode<synchronous>, transform_indices = @transform_1, window_bounds = array<i64: 128, 128>}, {pipeline_mode = #tpu.pipeline_mode<synchronous>, transform_indices = @transform_2, window_bounds = array<i64: 128, 128>}, {pipeline_mode = #tpu.pipeline_mode<synchronous>, transform_indices = @transform_3, window_bounds = array<i64: 128, 128>}, {pipeline_mode = #tpu.pipeline_mode<synchronous>, transform_indices = @transform_4, window_bounds = array<i64: 3, 128>}, {transform_indices = @transform_5, window_bounds = array<i64: 8, 128>}]} {
    %c0 = arith.constant 0 : index
    %c0_0 = arith.constant 0 : index
    %0 = vector.load %arg1[%c0, %c0_0] : memref<8x128xf32, #tpu.memory_space<vmem>>, vector<8x128xf32>
    %c0_1 = arith.constant 0 : index
    %c0_2 = arith.constant 0 : index
    %1 = vector.load %arg5[%c0_1, %c0_2] : memref<3x128xf32, #tpu.memory_space<vmem>>, vector<1x128xf32>
    %c1 = arith.constant 1 : index
    %c0_3 = arith.constant 0 : index
    %2 = vector.load %arg5[%c1, %c0_3] : memref<3x128xf32, #tpu.memory_space<vmem>>, vector<1x128xf32>
    %c2 = arith.constant 2 : index
    %c0_4 = arith.constant 0 : index
    %3 = vector.load %arg5[%c2, %c0_4] : memref<3x128xf32, #tpu.memory_space<vmem>>, vector<1x128xf32>
    %c0_5 = arith.constant 0 : index
    %c0_6 = arith.constant 0 : index
    %4 = vector.load %arg2[%c0_5, %c0_6] : memref<128x128xf32, #tpu.memory_space<vmem>>, vector<128x128xf32>
    %cst = arith.constant dense<0.000000e+00> : vector<8x128xf32>
    %5 = tpu.matmul %0, %4, %cst {dimension_numbers = #tpu.dot_dimension_numbers<[1], [0], [0], [1], [0, 0, 1, 1], [], []>} : vector<8x128xf32>, vector<128x128xf32>, vector<8x128xf32> -> vector<8x128xf32>
    %6 = vector.broadcast %1 : vector<1x128xf32> to vector<8x128xf32>
    %7 = arith.addf %5, %6 : vector<8x128xf32>
    %cst_7 = arith.constant 0.000000e+00 : f32
    %8 = vector.broadcast %cst_7 : f32 to vector<8x128xf32>
    %9 = arith.maximumf %7, %8 : vector<8x128xf32>
    %c0_8 = arith.constant 0 : index
    %c0_9 = arith.constant 0 : index
    %10 = vector.load %arg3[%c0_8, %c0_9] : memref<128x128xf32, #tpu.memory_space<vmem>>, vector<128x128xf32>
    %cst_10 = arith.constant dense<0.000000e+00> : vector<8x128xf32>
    %11 = tpu.matmul %9, %10, %cst_10 {dimension_numbers = #tpu.dot_dimension_numbers<[1], [0], [0], [1], [0, 0, 1, 1], [], []>} : vector<8x128xf32>, vector<128x128xf32>, vector<8x128xf32> -> vector<8x128xf32>
    %12 = vector.broadcast %2 : vector<1x128xf32> to vector<8x128xf32>
    %13 = arith.addf %11, %12 : vector<8x128xf32>
    %cst_11 = arith.constant 0.000000e+00 : f32
    %14 = vector.broadcast %cst_11 : f32 to vector<8x128xf32>
    %15 = arith.maximumf %13, %14 : vector<8x128xf32>
    %c0_12 = arith.constant 0 : index
    %c0_13 = arith.constant 0 : index
    %16 = vector.load %arg4[%c0_12, %c0_13] : memref<128x128xf32, #tpu.memory_space<vmem>>, vector<128x128xf32>
    %cst_14 = arith.constant dense<0.000000e+00> : vector<8x128xf32>
    %17 = tpu.matmul %15, %16, %cst_14 {dimension_numbers = #tpu.dot_dimension_numbers<[1], [0], [0], [1], [0, 0, 1, 1], [], []>} : vector<8x128xf32>, vector<128x128xf32>, vector<8x128xf32> -> vector<8x128xf32>
    %18 = vector.broadcast %3 : vector<1x128xf32> to vector<8x128xf32>
    %19 = arith.addf %17, %18 : vector<8x128xf32>
    %20 = arith.addf %19, %0 : vector<8x128xf32>
    %cst_15 = arith.constant 0.000000e+00 : f32
    %21 = vector.broadcast %cst_15 : f32 to vector<8x128xf32>
    %22 = arith.maximumf %20, %21 : vector<8x128xf32>
    %c0_16 = arith.constant 0 : index
    %c0_17 = arith.constant 0 : index
    %23 = vector.load %arg6[%c0_16, %c0_17] : memref<8x128xf32, #tpu.memory_space<vmem>>, vector<8x128xf32>
    tpu.vector_store %arg6[%c0_16, %c0_17], %22 {strides = array<i32>} : memref<8x128xf32, #tpu.memory_space<vmem>>, vector<8x128xf32>,
    return
  }
  func.func @transform_0(%arg0: i32) -> (i32, i32) {
    %c0_i32 = arith.constant 0 : i32
    %c0_i32_0 = arith.constant 0 : i32
    return %arg0, %c0_i32 : i32, i32
  }
  func.func @transform_1(%arg0: i32) -> (i32, i32) {
    %c0_i32 = arith.constant 0 : i32
    %c0_i32_0 = arith.constant 0 : i32
    %c0_i32_1 = arith.constant 0 : i32
    return %c0_i32, %c0_i32_0 : i32, i32
  }
  func.func @transform_2(%arg0: i32) -> (i32, i32) {
    %c0_i32 = arith.constant 0 : i32
    %c0_i32_0 = arith.constant 0 : i32
    %c0_i32_1 = arith.constant 0 : i32
    return %c0_i32, %c0_i32_0 : i32, i32
  }
  func.func @transform_3(%arg0: i32) -> (i32, i32) {
    %c0_i32 = arith.constant 0 : i32
    %c0_i32_0 = arith.constant 0 : i32
    %c0_i32_1 = arith.constant 0 : i32
    return %c0_i32, %c0_i32_0 : i32, i32
  }
  func.func @transform_4(%arg0: i32) -> (i32, i32) {
    %c0_i32 = arith.constant 0 : i32
    %c0_i32_0 = arith.constant 0 : i32
    %c0_i32_1 = arith.constant 0 : i32
    return %c0_i32, %c0_i32_0 : i32, i32
  }
  func.func @transform_5(%arg0: i32) -> (i32, i32) {
    %c0_i32 = arith.constant 0 : i32
    %c0_i32_0 = arith.constant 0 : i32
    return %arg0, %c0_i32 : i32, i32
  }
}

</mosaic_0001>

<llo_original>
// kernel: tpu_custom_call.1
$region0: #{tpu_custom_call.1}
  #allocation0 [shape = 'u32[]', space=smem, size = 0x4, offset = 0x4, fixed_abs, tag = 'smem constant byte address 0x4 - core index']
  #allocation1 [shape = 'u32[144,128]{1,0:T(1,128)}', space=vmem, size = 0x12000, scoped, tag = 'internal scratch']
  %s0 = inlined_call_operand.hbm [shape: f32[8,128], index: 0, kind: input, shape index: {}]
  %s1 = inlined_call_operand.hbm [shape: f32[128,128], index: 1, kind: input, shape index: {}]
  %s2 = inlined_call_operand.hbm [shape: f32[128,128], index: 2, kind: input, shape index: {}]
  %s3 = inlined_call_operand.hbm [shape: f32[128,128], index: 3, kind: input, shape index: {}]
  %s4 = inlined_call_operand.vmem [shape: f32[3,128], index: 4, kind: input, shape index: {}]
  %s5 = inlined_call_operand.hbm [shape: f32[8,128], index: 5, kind: output, shape index: {}]
  %s6 = sld [smem:[#allocation0]]
  $region46: #{tpu_custom_call.1} parent=0
    _
  %s8 = ssub.s32 1, %s6
  %s9 = scalar_select 0, %s8, %s6
  $region1: #{tpu_custom_call.1} parent=0
    #allocation2 [shape = 'u8[4096]{0}', space=vmem, size = 0x1000, scoped, tag = 'input window, operand 0, single buffered']
    #allocation3 [shape = 's32[1]{0}', space=sflag, size = 0x4, scoped, tag = 'scoped memory for tpu_custom_call.1']
    #allocation4 [shape = 's32[1]{0}', space=sflag, size = 0x4, scoped, tag = 'scoped memory for tpu_custom_call.1']
    #allocation5 [shape = 'u8[65536]{0}', space=vmem, size = 0x10000, scoped, tag = 'input window, operand 1, single buffered']
    #allocation6 [shape = 's32[1]{0}', space=sflag, size = 0x4, scoped, tag = 'scoped memory for tpu_custom_call.1']
    #allocation7 [shape = 'u8[65536]{0}', space=vmem, size = 0x10000, scoped, tag = 'input window, operand 2, single buffered']
    #allocation8 [shape = 'u8[65536]{0}', space=vmem, size = 0x10000, scoped, tag = 'input window, operand 3, single buffered']
    #allocation9 [shape = 's32[1]{0}', space=sflag, size = 0x4, scoped, tag = 'scoped memory for tpu_custom_call.1']
    #allocation10 [shape = 'u8[4096]{0}', space=vmem, size = 0x1000, scoped, tag = 'output window, operand 0, single buffered']
    %10 = vsyncpa [#allocation3], 0
    %11 = vsyncpa [#allocation6], 0
    %12 = vsyncpa [#allocation9], 0
    %13 = vsyncpa [#allocation4], 0
    // Predicated region
    $region2: #{tpu_custom_call.1} parent=1 // pred_check
      _
    $region3: #{tpu_custom_call.1} parent=1 // pred_check_branch
      %15 = sbr.rel (0) target = $region5
    $region4: #{tpu_custom_call.1} parent=1 // pred_region
      %s17 = ssub.s32 128, 128
      %18 = vsyncadd [#allocation3], %s17
      %s20 = sshll.u32 [#allocation2], 4
      %s21 = int_to_ptr.vmem [resolvable:$true] %s20
      %23 = dma.hbm_to_vmem [thread:$0]  %s0, 128, %s21, [#allocation3]
    $region5: #{tpu_custom_call.1} parent=1 // pred_fallthru
      _
    // Predicated region
    $region6: #{tpu_custom_call.1} parent=1 // pred_check
      _
    $region7: #{tpu_custom_call.1} parent=1 // pred_check_branch
      %25 = sbr.rel (0) target = $region9
    $region8: #{tpu_custom_call.1} parent=1 // pred_region
      %s27 = ssub.s32 2048, 2048
      %28 = vsyncadd [#allocation6], %s27
      %s29 = sshll.u32 [#allocation5], 4
      %s30 = int_to_ptr.vmem [resolvable:$true] %s29
      %35 = dma.hbm_to_vmem [thread:$0]  %s1, 2048, %s30, [#allocation6], 128, 128, 8
    $region9: #{tpu_custom_call.1} parent=1 // pred_fallthru
      _
    // Predicated region
    $region10: #{tpu_custom_call.1} parent=1 // pred_check
      _
    $region11: #{tpu_custom_call.1} parent=1 // pred_check_branch
      %37 = sbr.rel (0) target = $region13
    $region12: #{tpu_custom_call.1} parent=1 // pred_region
      %s39 = ssub.s32 2048, 2048
      %40 = vsyncadd [#allocation6], %s39
      %s41 = sshll.u32 [#allocation7], 4
      %s42 = int_to_ptr.vmem [resolvable:$true] %s41
      %47 = dma.hbm_to_vmem [thread:$0]  %s2, 2048, %s42, [#allocation6], 128, 128, 8
    $region13: #{tpu_custom_call.1} parent=1 // pred_fallthru
      _
    // Predicated region
    $region14: #{tpu_custom_call.1} parent=1 // pred_check
      _
    $region15: #{tpu_custom_call.1} parent=1 // pred_check_branch
      %49 = sbr.rel (0) target = $region17
    $region16: #{tpu_custom_call.1} parent=1 // pred_region
      %s51 = ssub.s32 2048, 2048
      %52 = vsyncadd [#allocation9], %s51
      %s53 = sshll.u32 [#allocation8], 4
      %s54 = int_to_ptr.vmem [resolvable:$true] %s53
      %59 = dma.hbm_to_vmem [thread:$0]  %s3, 2048, %s54, [#allocation9], 128, 128, 8
    $region17: #{tpu_custom_call.1} parent=1 // pred_fallthru
      _
    // Predicated region
    $region18: #{tpu_custom_call.1} parent=1 // pred_check
      _
    $region19: #{tpu_custom_call.1} parent=1 // pred_check_branch
      %61 = sbr.rel (0) target = $region21
    $region20: #{tpu_custom_call.1} parent=1 // pred_region
      _
    $region21: #{tpu_custom_call.1} parent=1 // pred_fallthru
      _
    // Predicated region
    $region22: #{tpu_custom_call.1} parent=1 // pred_check
      _
    $region23: #{tpu_custom_call.1} parent=1 // pred_check_branch
      %63 = sbr.rel (0) target = $region25
    $region24: #{tpu_custom_call.1} parent=1 // pred_region
      %64 = dma.done [#allocation3], 128
    $region25: #{tpu_custom_call.1} parent=1 // pred_fallthru
      _
    // Predicated region
    $region26: #{tpu_custom_call.1} parent=1 // pred_check
      _
    $region27: #{tpu_custom_call.1} parent=1 // pred_check_branch
      %66 = sbr.rel (0) target = $region29
    $region28: #{tpu_custom_call.1} parent=1 // pred_region
      %67 = dma.done [#allocation6], 2048
    $region29: #{tpu_custom_call.1} parent=1 // pred_fallthru
      _
    // Predicated region
    $region30: #{tpu_custom_call.1} parent=1 // pred_check
      _
    $region31: #{tpu_custom_call.1} parent=1 // pred_check_branch
      %69 = sbr.rel (0) target = $region33
    $region32: #{tpu_custom_call.1} parent=1 // pred_region
      %70 = dma.done [#allocation6], 2048
    $region33: #{tpu_custom_call.1} parent=1 // pred_fallthru
      _
    // Predicated region
    $region34: #{tpu_custom_call.1} parent=1 // pred_check
      _
    $region35: #{tpu_custom_call.1} parent=1 // pred_check_branch
      %72 = sbr.rel (0) target = $region37
    $region36: #{tpu_custom_call.1} parent=1 // pred_region
      %73 = dma.done [#allocation9], 2048
    $region37: #{tpu_custom_call.1} parent=1 // pred_fallthru
      _
    %v74 = vld [vmem:[#allocation2] sm:$0xff]
    %v75 = vld [vmem:[%s4] sm:$0x1]
    %v76 = vld [vmem:[%s4 + $0x1] sm:$0x1]
    %v77 = vld [vmem:[%s4 + $0x2] sm:$0x1]
    %v78 = vld [vmem:[#allocation5] sm:$0xff]
    %v79 = vld [vmem:[#allocation5 + $0x8] sm:$0xff]
    %v80 = vld [vmem:[#allocation5 + $0x10] sm:$0xff]
    %v81 = vld [vmem:[#allocation5 + $0x18] sm:$0xff]
    %v82 = vld [vmem:[#allocation5 + $0x20] sm:$0xff]
    %v83 = vld [vmem:[#allocation5 + $0x28] sm:$0xff]
    %v84 = vld [vmem:[#allocation5 + $0x30] sm:$0xff]
    %v85 = vld [vmem:[#allocation5 + $0x38] sm:$0xff]
    %v86 = vld [vmem:[#allocation5 + $0x40] sm:$0xff]
    %v87 = vld [vmem:[#allocation5 + $0x48] sm:$0xff]
    %v88 = vld [vmem:[#allocation5 + $0x50] sm:$0xff]
    %v89 = vld [vmem:[#allocation5 + $0x58] sm:$0xff]
    %v90 = vld [vmem:[#allocation5 + $0x60] sm:$0xff]
    %v91 = vld [vmem:[#allocation5 + $0x68] sm:$0xff]
    %v92 = vld [vmem:[#allocation5 + $0x70] sm:$0xff]
    %v93 = vld [vmem:[#allocation5 + $0x78] sm:$0xff]
    %v94 = vlaneseq
    %v95 = vshrl.u32 %v94, 7
    %v96 = vsub.s32 0, %v95
    %v97 = vrot.slane %v75, %v96
    %98 = vmatprep.subr.mxu0 0.0
    %99 = vmatpush1.msra.mxu0 %v78
    %100 = vmatprep.subr.mxu0 0.0
    %101 = vmatpush1.msra.mxu0 %v79
    %102 = vmatprep.subr.mxu0 0.0
    %103 = vmatpush1.msra.mxu0 %v80
    %104 = vmatprep.subr.mxu0 0.0
    %105 = vmatpush1.msra.mxu0 %v81
    %106 = vmatprep.subr.mxu0 0.0
    %107 = vmatpush1.msra.mxu0 %v82
    %108 = vmatprep.subr.mxu0 0.0
    %109 = vmatpush1.msra.mxu0 %v83
    %110 = vmatprep.subr.mxu0 0.0
    %111 = vmatpush1.msra.mxu0 %v84
    %112 = vmatprep.subr.mxu0 0.0
    %113 = vmatpush1.msra.mxu0 %v85
    %114 = vmatprep.subr.mxu0 0.0
    %115 = vmatpush1.msra.mxu0 %v86
    %116 = vmatprep.subr.mxu0 0.0
    %117 = vmatpush1.msra.mxu0 %v87
    %118 = vmatprep.subr.mxu0 0.0
    %119 = vmatpush1.msra.mxu0 %v88
    %120 = vmatprep.subr.mxu0 0.0
    %121 = vmatpush1.msra.mxu0 %v89
    %122 = vmatprep.subr.mxu0 0.0
    %123 = vmatpush1.msra.mxu0 %v90
    %124 = vmatprep.subr.mxu0 0.0
    %125 = vmatpush1.msra.mxu0 %v91
    %126 = vmatprep.subr.mxu0 0.0
    %127 = vmatpush1.msra.mxu0 %v92
    %128 = vmatprep.subr.mxu0 0.0
    %129 = vmatpush1.msra.mxu0 %v93
    %130 = vmatprep.subr.mxu0 0.0
    %131 = vmatpush1.msra.mxu0 0.0
    %132 = vmatprep.subr.mxu0 0.0
    %133 = vmatpush1.msra.mxu0 0.0
    %134 = vmatprep.subr.mxu0 0.0
    %135 = vmatpush1.msra.mxu0 0.0
    %136 = vmatprep.subr.mxu0 0.0
    %137 = vmatpush1.msra.mxu0 0.0
    %138 = vmatprep.subr.mxu0 0.0
    %139 = vmatpush1.msra.mxu0 0.0
    %140 = vmatprep.subr.mxu0 0.0
    %141 = vmatpush1.msra.mxu0 0.0
    %142 = vmatprep.subr.mxu0 0.0
    %143 = vmatpush1.msra.mxu0 0.0
    %144 = vmatprep.subr.mxu0 0.0
    %145 = vmatpush1.msra.mxu0 0.0
    %146 = vmatprep.subr.mxu0 0.0
    %147 = vmatpush1.msra.mxu0 0.0
    %148 = vmatprep.subr.mxu0 0.0
    %149 = vmatpush1.msra.mxu0 0.0
    %150 = vmatprep.subr.mxu0 0.0
    %151 = vmatpush1.msra.mxu0 0.0
    %152 = vmatprep.subr.mxu0 0.0
    %153 = vmatpush1.msra.mxu0 0.0
    %154 = vmatprep.subr.mxu0 0.0
    %155 = vmatpush1.msra.mxu0 0.0
    %156 = vmatprep.subr.mxu0 0.0
    %157 = vmatpush1.msra.mxu0 0.0
    %158 = vmatprep.subr.mxu0 0.0
    %159 = vmatpush1.msra.mxu0 0.0
    %160 = vmatprep.subr.mxu0 0.0
    %161 = vmatpush1.msra.mxu0 0.0
    %162 = vmatprep.mubr.f32.mxu0 0.0
    %163 = vmatmul.mubr.f32.gmra.mrb[0].mxu0 %v74
    %v164 = vpop.f32.mrb[0].mxu0
    %v165 = vadd.f32 %v97, %v164
    %v166 = vpop.f32.mrb[0].mxu0
    %167 = vdwg.mxu0
    %v168 = vmax.f32 %v165, 0.0
    %v169 = vld [vmem:[#allocation7] sm:$0xff]
    %v170 = vld [vmem:[#allocation7 + $0x8] sm:$0xff]
    %v171 = vld [vmem:[#allocation7 + $0x10] sm:$0xff]
    %v172 = vld [vmem:[#allocation7 + $0x18] sm:$0xff]
    %v173 = vld [vmem:[#allocation7 + $0x20] sm:$0xff]
    %v174 = vld [vmem:[#allocation7 + $0x28] sm:$0xff]
    %v175 = vld [vmem:[#allocation7 + $0x30] sm:$0xff]
    %v176 = vld [vmem:[#allocation7 + $0x38] sm:$0xff]
    %v177 = vld [vmem:[#allocation7 + $0x40] sm:$0xff]
    %v178 = vld [vmem:[#allocation7 + $0x48] sm:$0xff]
    %v179 = vld [vmem:[#allocation7 + $0x50] sm:$0xff]
    %v180 = vld [vmem:[#allocation7 + $0x58] sm:$0xff]
    %v181 = vld [vmem:[#allocation7 + $0x60] sm:$0xff]
    %v182 = vld [vmem:[#allocation7 + $0x68] sm:$0xff]
    %v183 = vld [vmem:[#allocation7 + $0x70] sm:$0xff]
    %v184 = vld [vmem:[#allocation7 + $0x78] sm:$0xff]
    %v185 = vlaneseq
    %v186 = vshrl.u32 %v185, 7
    %v187 = vsub.s32 0, %v186
    %v188 = vrot.slane %v76, %v187
    %189 = vmatprep.subr.mxu0 0.0
    %190 = vmatpush1.msra.mxu0 %v169
    %191 = vmatprep.subr.mxu0 0.0
    %192 = vmatpush1.msra.mxu0 %v170
    %193 = vmatprep.subr.mxu0 0.0
    %194 = vmatpush1.msra.mxu0 %v171
    %195 = vmatprep.subr.mxu0 0.0
    %196 = vmatpush1.msra.mxu0 %v172
    %197 = vmatprep.subr.mxu0 0.0
    %198 = vmatpush1.msra.mxu0 %v173
    %199 = vmatprep.subr.mxu0 0.0
    %200 = vmatpush1.msra.mxu0 %v174
    %201 = vmatprep.subr.mxu0 0.0
    %202 = vmatpush1.msra.mxu0 %v175
    %203 = vmatprep.subr.mxu0 0.0
    %204 = vmatpush1.msra.mxu0 %v176
    %205 = vmatprep.subr.mxu0 0.0
    %206 = vmatpush1.msra.mxu0 %v177
    %207 = vmatprep.subr.mxu0 0.0
    %208 = vmatpush1.msra.mxu0 %v178
    %209 = vmatprep.subr.mxu0 0.0
    %210 = vmatpush1.msra.mxu0 %v179
    %211 = vmatprep.subr.mxu0 0.0
    %212 = vmatpush1.msra.mxu0 %v180
    %213 = vmatprep.subr.mxu0 0.0
    %214 = vmatpush1.msra.mxu0 %v181
    %215 = vmatprep.subr.mxu0 0.0
    %216 = vmatpush1.msra.mxu0 %v182
    %217 = vmatprep.subr.mxu0 0.0
    %218 = vmatpush1.msra.mxu0 %v183
    %219 = vmatprep.subr.mxu0 0.0
    %220 = vmatpush1.msra.mxu0 %v184
    %221 = vmatprep.subr.mxu0 0.0
    %222 = vmatpush1.msra.mxu0 0.0
    %223 = vmatprep.subr.mxu0 0.0
    %224 = vmatpush1.msra.mxu0 0.0
    %225 = vmatprep.subr.mxu0 0.0
    %226 = vmatpush1.msra.mxu0 0.0
    %227 = vmatprep.subr.mxu0 0.0
    %228 = vmatpush1.msra.mxu0 0.0
    %229 = vmatprep.subr.mxu0 0.0
    %230 = vmatpush1.msra.mxu0 0.0
    %231 = vmatprep.subr.mxu0 0.0
    %232 = vmatpush1.msra.mxu0 0.0
    %233 = vmatprep.subr.mxu0 0.0
    %234 = vmatpush1.msra.mxu0 0.0
    %235 = vmatprep.subr.mxu0 0.0
    %236 = vmatpush1.msra.mxu0 0.0
    %237 = vmatprep.subr.mxu0 0.0
    %238 = vmatpush1.msra.mxu0 0.0
    %239 = vmatprep.subr.mxu0 0.0
    %240 = vmatpush1.msra.mxu0 0.0
    %241 = vmatprep.subr.mxu0 0.0
    %242 = vmatpush1.msra.mxu0 0.0
    %243 = vmatprep.subr.mxu0 0.0
    %244 = vmatpush1.msra.mxu0 0.0
    %245 = vmatprep.subr.mxu0 0.0
    %246 = vmatpush1.msra.mxu0 0.0
    %247 = vmatprep.subr.mxu0 0.0
    %248 = vmatpush1.msra.mxu0 0.0
    %249 = vmatprep.subr.mxu0 0.0
    %250 = vmatpush1.msra.mxu0 0.0
    %251 = vmatprep.subr.mxu0 0.0
    %252 = vmatpush1.msra.mxu0 0.0
    %253 = vmatprep.mubr.f32.mxu0 0.0
    %254 = vmatmul.mubr.f32.gmra.mrb[0].mxu0 %v168
    %v255 = vpop.f32.mrb[0].mxu0
    %v256 = vadd.f32 %v188, %v255
    %v257 = vpop.f32.mrb[0].mxu0
    %258 = vdwg.mxu0
    %v259 = vmax.f32 %v256, 0.0
    %v260 = vld [vmem:[#allocation8] sm:$0xff]
    %v261 = vld [vmem:[#allocation8 + $0x8] sm:$0xff]
    %v262 = vld [vmem:[#allocation8 + $0x10] sm:$0xff]
    %v263 = vld [vmem:[#allocation8 + $0x18] sm:$0xff]
    %v264 = vld [vmem:[#allocation8 + $0x20] sm:$0xff]
    %v265 = vld [vmem:[#allocation8 + $0x28] sm:$0xff]
    %v266 = vld [vmem:[#allocation8 + $0x30] sm:$0xff]
    %v267 = vld [vmem:[#allocation8 + $0x38] sm:$0xff]
    %v268 = vld [vmem:[#allocation8 + $0x40] sm:$0xff]
    %v269 = vld [vmem:[#allocation8 + $0x48] sm:$0xff]
    %v270 = vld [vmem:[#allocation8 + $0x50] sm:$0xff]
    %v271 = vld [vmem:[#allocation8 + $0x58] sm:$0xff]
    %v272 = vld [vmem:[#allocation8 + $0x60] sm:$0xff]
    %v273 = vld [vmem:[#allocation8 + $0x68] sm:$0xff]
    %v274 = vld [vmem:[#allocation8 + $0x70] sm:$0xff]
    %v275 = vld [vmem:[#allocation8 + $0x78] sm:$0xff]
    %v276 = vlaneseq
    %v277 = vshrl.u32 %v276, 7
    %v278 = vsub.s32 0, %v277
    %v279 = vrot.slane %v77, %v278
    %280 = vmatprep.subr.mxu0 0.0
    %281 = vmatpush1.msra.mxu0 %v260
    %282 = vmatprep.subr.mxu0 0.0
    %283 = vmatpush1.msra.mxu0 %v261
    %284 = vmatprep.subr.mxu0 0.0
    %285 = vmatpush1.msra.mxu0 %v262
    %286 = vmatprep.subr.mxu0 0.0
    %287 = vmatpush1.msra.mxu0 %v263
    %288 = vmatprep.subr.mxu0 0.0
    %289 = vmatpush1.msra.mxu0 %v264
    %290 = vmatprep.subr.mxu0 0.0
    %291 = vmatpush1.msra.mxu0 %v265
    %292 = vmatprep.subr.mxu0 0.0
    %293 = vmatpush1.msra.mxu0 %v266
    %294 = vmatprep.subr.mxu0 0.0
    %295 = vmatpush1.msra.mxu0 %v267
    %296 = vmatprep.subr.mxu0 0.0
    %297 = vmatpush1.msra.mxu0 %v268
    %298 = vmatprep.subr.mxu0 0.0
    %299 = vmatpush1.msra.mxu0 %v269
    %300 = vmatprep.subr.mxu0 0.0
    %301 = vmatpush1.msra.mxu0 %v270
    %302 = vmatprep.subr.mxu0 0.0
    %303 = vmatpush1.msra.mxu0 %v271
    %304 = vmatprep.subr.mxu0 0.0
    %305 = vmatpush1.msra.mxu0 %v272
    %306 = vmatprep.subr.mxu0 0.0
    %307 = vmatpush1.msra.mxu0 %v273
    %308 = vmatprep.subr.mxu0 0.0
    %309 = vmatpush1.msra.mxu0 %v274
    %310 = vmatprep.subr.mxu0 0.0
    %311 = vmatpush1.msra.mxu0 %v275
    %312 = vmatprep.subr.mxu0 0.0
    %313 = vmatpush1.msra.mxu0 0.0
    %314 = vmatprep.subr.mxu0 0.0
    %315 = vmatpush1.msra.mxu0 0.0
    %316 = vmatprep.subr.mxu0 0.0
    %317 = vmatpush1.msra.mxu0 0.0
    %318 = vmatprep.subr.mxu0 0.0
    %319 = vmatpush1.msra.mxu0 0.0
    %320 = vmatprep.subr.mxu0 0.0
    %321 = vmatpush1.msra.mxu0 0.0
    %322 = vmatprep.subr.mxu0 0.0
    %323 = vmatpush1.msra.mxu0 0.0
    %324 = vmatprep.subr.mxu0 0.0
    %325 = vmatpush1.msra.mxu0 0.0
    %326 = vmatprep.subr.mxu0 0.0
    %327 = vmatpush1.msra.mxu0 0.0
    %328 = vmatprep.subr.mxu0 0.0
    %329 = vmatpush1.msra.mxu0 0.0
    %330 = vmatprep.subr.mxu0 0.0
    %331 = vmatpush1.msra.mxu0 0.0
    %332 = vmatprep.subr.mxu0 0.0
    %333 = vmatpush1.msra.mxu0 0.0
    %334 = vmatprep.subr.mxu0 0.0
    %335 = vmatpush1.msra.mxu0 0.0
    %336 = vmatprep.subr.mxu0 0.0
    %337 = vmatpush1.msra.mxu0 0.0
    %338 = vmatprep.subr.mxu0 0.0
    %339 = vmatpush1.msra.mxu0 0.0
    %340 = vmatprep.subr.mxu0 0.0
    %341 = vmatpush1.msra.mxu0 0.0
    %342 = vmatprep.subr.mxu0 0.0
    %343 = vmatpush1.msra.mxu0 0.0
    %344 = vmatprep.mubr.f32.mxu0 0.0
    %345 = vmatmul.mubr.f32.gmra.mrb[0].mxu0 %v259
    %v346 = vpop.f32.mrb[0].mxu0
    %v347 = vadd.f32 %v279, %v346
    %v348 = vpop.f32.mrb[0].mxu0
    %349 = vdwg.mxu0
    %v350 = vadd.f32 %v347, %v74
    %v351 = vmax.f32 %v350, 0.0
    %352 = vst [vmem:[#allocation10] sm:$0xff] %v351
    // Predicated region
    $region38: #{tpu_custom_call.1} parent=1 // pred_check
      _
    $region39: #{tpu_custom_call.1} parent=1 // pred_check_branch
      %354 = sbr.rel (0) target = $region41
    $region40: #{tpu_custom_call.1} parent=1 // pred_region
      %s356 = ssub.s32 128, 128
      %357 = vsyncadd [#allocation4], %s356
      %s359 = sshll.u32 [#allocation10], 4
      %s360 = int_to_ptr.vmem [resolvable:$true] %s359
      %362 = dma.vmem_to_hbm [thread:$0]  %s360, 128, %s5, [#allocation4]
    $region41: #{tpu_custom_call.1} parent=1 // pred_fallthru
      _
    // Predicated region
    $region42: #{tpu_custom_call.1} parent=1 // pred_check
      _
    $region43: #{tpu_custom_call.1} parent=1 // pred_check_branch
      %364 = sbr.rel (0) target = $region45
    $region44: #{tpu_custom_call.1} parent=1 // pred_region
      %365 = dma.done [#allocation4], 128
    $region45: #{tpu_custom_call.1} parent=1 // pred_fallthru
      _
    %366 = vsyncpa [#allocation3], 1
    %367 = vsyncpa [#allocation6], 1
    %368 = vsyncpa [#allocation9], 1
    %369 = vsyncpa [#allocation4], 1

// kernel: tpu_custom_call.1
$region0: #{tpu_custom_call.1}
  #allocation0 [shape = 'u32[]', space=smem, size = 0x4, offset = 0x4, fixed_abs, tag = 'smem constant byte address 0x4 - core index']
  #allocation1 [shape = 'u32[144,128]{1,0:T(1,128)}', space=vmem, size = 0x12000, scoped, tag = 'internal scratch']
  %s0 = inlined_call_operand.hbm [shape: f32[8,128], index: 0, kind: input, shape index: {}]
  %s1 = inlined_call_operand.hbm [shape: f32[128,128], index: 1, kind: input, shape index: {}]
  %s2 = inlined_call_operand.hbm [shape: f32[128,128], index: 2, kind: input, shape index: {}]
  %s3 = inlined_call_operand.hbm [shape: f32[128,128], index: 3, kind: input, shape index: {}]
  %s4 = inlined_call_operand.vmem [shape: f32[3,128], index: 4, kind: input, shape index: {}]
  %s5 = inlined_call_operand.hbm [shape: f32[8,128], index: 5, kind: output, shape index: {}]
  %s6 = sld [smem:[#allocation0]]
  $region46: #{tpu_custom_call.1} parent=0
    _
  %s8 = ssub.s32 1, %s6
  %s9 = scalar_select 0, %s8, %s6
  $region1: #{tpu_custom_call.1} parent=0
    #allocation2 [shape = 'u8[4096]{0}', space=vmem, size = 0x1000, scoped, tag = 'input window, operand 0, single buffered']
    #allocation3 [shape = 's32[1]{0}', space=sflag, size = 0x4, scoped, tag = 'scoped memory for tpu_custom_call.1']
    #allocation4 [shape = 's32[1]{0}', space=sflag, size = 0x4, scoped, tag = 'scoped memory for tpu_custom_call.1']
    #allocation5 [shape = 'u8[65536]{0}', space=vmem, size = 0x10000, scoped, tag = 'input window, operand 1, single buffered']
    #allocation6 [shape = 's32[1]{0}', space=sflag, size = 0x4, scoped, tag = 'scoped memory for tpu_custom_call.1']
    #allocation7 [shape = 'u8[65536]{0}', space=vmem, size = 0x10000, scoped, tag = 'input window, operand 2, single buffered']
    #allocation8 [shape = 'u8[65536]{0}', space=vmem, size = 0x10000, scoped, tag = 'input window, operand 3, single buffered']
    #allocation9 [shape = 's32[1]{0}', space=sflag, size = 0x4, scoped, tag = 'scoped memory for tpu_custom_call.1']
    #allocation10 [shape = 'u8[4096]{0}', space=vmem, size = 0x1000, scoped, tag = 'output window, operand 0, single buffered']
    %10 = vsyncpa [#allocation3], 0
    %11 = vsyncpa [#allocation6], 0
    %12 = vsyncpa [#allocation9], 0
    %13 = vsyncpa [#allocation4], 0
    // Predicated region
    $region2: #{tpu_custom_call.1} parent=1 // pred_check
      _
    $region3: #{tpu_custom_call.1} parent=1 // pred_check_branch
      %15 = sbr.rel (0) target = $region5
    $region4: #{tpu_custom_call.1} parent=1 // pred_region
      %s17 = ssub.s32 128, 128
      %18 = vsyncadd [#allocation3], %s17
      %s20 = sshll.u32 [#allocation2], 4
      %s21 = int_to_ptr.vmem [resolvable:$true] %s20
      %23 = dma.hbm_to_vmem [thread:$0]  %s0, 128, %s21, [#allocation3]
    $region5: #{tpu_custom_call.1} parent=1 // pred_fallthru
      _
    // Predicated region
    $region6: #{tpu_custom_call.1} parent=1 // pred_check
      _
    $region7: #{tpu_custom_call.1} parent=1 // pred_check_branch
      %25 = sbr.rel (0) target = $region9
    $region8: #{tpu_custom_call.1} parent=1 // pred_region
      %s27 = ssub.s32 2048, 2048
      %28 = vsyncadd [#allocation6], %s27
      %s29 = sshll.u32 [#allocation5], 4
      %s30 = int_to_ptr.vmem [resolvable:$true] %s29
      %35 = dma.hbm_to_vmem [thread:$0]  %s1, 2048, %s30, [#allocation6], 128, 128, 8
    $region9: #{tpu_custom_call.1} parent=1 // pred_fallthru
      _
    // Predicated region
    $region10: #{tpu_custom_call.1} parent=1 // pred_check
      _
    $region11: #{tpu_custom_call.1} parent=1 // pred_check_branch
      %37 = sbr.rel (0) target = $region13
    $region12: #{tpu_custom_call.1} parent=1 // pred_region
      %s39 = ssub.s32 2048, 2048
      %40 = vsyncadd [#allocation6], %s39
      %s41 = sshll.u32 [#allocation7], 4
      %s42 = int_to_ptr.vmem [resolvable:$true] %s41
      %47 = dma.hbm_to_vmem [thread:$0]  %s2, 2048, %s42, [#allocation6], 128, 128, 8
    $region13: #{tpu_custom_call.1} parent=1 // pred_fallthru
      _
    // Predicated region
    $region14: #{tpu_custom_call.1} parent=1 // pred_check
      _
    $region15: #{tpu_custom_call.1} parent=1 // pred_check_branch
      %49 = sbr.rel (0) target = $region17
    $region16: #{tpu_custom_call.1} parent=1 // pred_region
      %s51 = ssub.s32 2048, 2048
      %52 = vsyncadd [#allocation9], %s51
      %s53 = sshll.u32 [#allocation8], 4
      %s54 = int_to_ptr.vmem [resolvable:$true] %s53
      %59 = dma.hbm_to_vmem [thread:$0]  %s3, 2048, %s54, [#allocation9], 128, 128, 8
    $region17: #{tpu_custom_call.1} parent=1 // pred_fallthru
      _
    // Predicated region
    $region18: #{tpu_custom_call.1} parent=1 // pred_check
      _
    $region19: #{tpu_custom_call.1} parent=1 // pred_check_branch
      %61 = sbr.rel (0) target = $region21
    $region20: #{tpu_custom_call.1} parent=1 // pred_region
      _
    $region21: #{tpu_custom_call.1} parent=1 // pred_fallthru
      _
    // Predicated region
    $region22: #{tpu_custom_call.1} parent=1 // pred_check
      _
    $region23: #{tpu_custom_call.1} parent=1 // pred_check_branch
      %63 = sbr.rel (0) target = $region25
    $region24: #{tpu_custom_call.1} parent=1 // pred_region
      %64 = dma.done [#allocation3], 128
    $region25: #{tpu_custom_call.1} parent=1 // pred_fallthru
      _
    // Predicated region
    $region26: #{tpu_custom_call.1} parent=1 // pred_check
      _
    $region27: #{tpu_custom_call.1} parent=1 // pred_check_branch
      %66 = sbr.rel (0) target = $region29
    $region28: #{tpu_custom_call.1} parent=1 // pred_region
      %67 = dma.done [#allocation6], 2048
    $region29: #{tpu_custom_call.1} parent=1 // pred_fallthru
      _
    // Predicated region
    $region30: #{tpu_custom_call.1} parent=1 // pred_check
      _
    $region31: #{tpu_custom_call.1} parent=1 // pred_check_branch
      %69 = sbr.rel (0) target = $region33
    $region32: #{tpu_custom_call.1} parent=1 // pred_region
      %70 = dma.done [#allocation6], 2048
    $region33: #{tpu_custom_call.1} parent=1 // pred_fallthru
      _
    // Predicated region
    $region34: #{tpu_custom_call.1} parent=1 // pred_check
      _
    $region35: #{tpu_custom_call.1} parent=1 // pred_check_branch
      %72 = sbr.rel (0) target = $region37
    $region36: #{tpu_custom_call.1} parent=1 // pred_region
      %73 = dma.done [#allocation9], 2048
    $region37: #{tpu_custom_call.1} parent=1 // pred_fallthru
      _
    %v74 = vld [vmem:[#allocation2] sm:$0xff]
    %v75 = vld [vmem:[%s4] sm:$0x1]
    %v76 = vld [vmem:[%s4 + $0x1] sm:$0x1]
    %v77 = vld [vmem:[%s4 + $0x2] sm:$0x1]
    %v78 = vld [vmem:[#allocation5] sm:$0xff]
    %v79 = vld [vmem:[#allocation5 + $0x8] sm:$0xff]
    %v80 = vld [vmem:[#allocation5 + $0x10] sm:$0xff]
    %v81 = vld [vmem:[#allocation5 + $0x18] sm:$0xff]
    %v82 = vld [vmem:[#allocation5 + $0x20] sm:$0xff]
    %v83 = vld [vmem:[#allocation5 + $0x28] sm:$0xff]
    %v84 = vld [vmem:[#allocation5 + $0x30] sm:$0xff]
    %v85 = vld [vmem:[#allocation5 + $0x38] sm:$0xff]
    %v86 = vld [vmem:[#allocation5 + $0x40] sm:$0xff]
    %v87 = vld [vmem:[#allocation5 + $0x48] sm:$0xff]
    %v88 = vld [vmem:[#allocation5 + $0x50] sm:$0xff]
    %v89 = vld [vmem:[#allocation5 + $0x58] sm:$0xff]
    %v90 = vld [vmem:[#allocation5 + $0x60] sm:$0xff]
    %v91 = vld [vmem:[#allocation5 + $0x68] sm:$0xff]
    %v92 = vld [vmem:[#allocation5 + $0x70] sm:$0xff]
    %v93 = vld [vmem:[#allocation5 + $0x78] sm:$0xff]
    %v94 = vlaneseq
    %v95 = vshrl.u32 %v94, 7
    %v96 = vsub.s32 0, %v95
    %v97 = vrot.slane %v75, %v96
    %98 = vmatprep.subr.mxu0 0.0
    %99 = vmatpush1.msra.mxu0 %v78
    %100 = vmatprep.subr.mxu0 0.0
    %101 = vmatpush1.msra.mxu0 %v79
    %102 = vmatprep.subr.mxu0 0.0
    %103 = vmatpush1.msra.mxu0 %v80
    %104 = vmatprep.subr.mxu0 0.0
    %105 = vmatpush1.msra.mxu0 %v81
    %106 = vmatprep.subr.mxu0 0.0
    %107 = vmatpush1.msra.mxu0 %v82
    %108 = vmatprep.subr.mxu0 0.0
    %109 = vmatpush1.msra.mxu0 %v83
    %110 = vmatprep.subr.mxu0 0.0
    %111 = vmatpush1.msra.mxu0 %v84
    %112 = vmatprep.subr.mxu0 0.0
    %113 = vmatpush1.msra.mxu0 %v85
    %114 = vmatprep.subr.mxu0 0.0
    %115 = vmatpush1.msra.mxu0 %v86
    %116 = vmatprep.subr.mxu0 0.0
    %117 = vmatpush1.msra.mxu0 %v87
    %118 = vmatprep.subr.mxu0 0.0
    %119 = vmatpush1.msra.mxu0 %v88
    %120 = vmatprep.subr.mxu0 0.0
    %121 = vmatpush1.msra.mxu0 %v89
    %122 = vmatprep.subr.mxu0 0.0
    %123 = vmatpush1.msra.mxu0 %v90
    %124 = vmatprep.subr.mxu0 0.0
    %125 = vmatpush1.msra.mxu0 %v91
    %126 = vmatprep.subr.mxu0 0.0
    %127 = vmatpush1.msra.mxu0 %v92
    %128 = vmatprep.subr.mxu0 0.0
    %129 = vmatpush1.msra.mxu0 %v93
    %130 = vmatprep.subr.mxu0 0.0
    %131 = vmatpush1.msra.mxu0 0.0
    %132 = vmatprep.subr.mxu0 0.0
    %133 = vmatpush1.msra.mxu0 0.0
    %134 = vmatprep.subr.mxu0 0.0
    %135 = vmatpush1.msra.mxu0 0.0
    %136 = vmatprep.subr.mxu0 0.0
    %137 = vmatpush1.msra.mxu0 0.0
    %138 = vmatprep.subr.mxu0 0.0
    %139 = vmatpush1.msra.mxu0 0.0
    %140 = vmatprep.subr.mxu0 0.0
    %141 = vmatpush1.msra.mxu0 0.0
    %142 = vmatprep.subr.mxu0 0.0
    %143 = vmatpush1.msra.mxu0 0.0
    %144 = vmatprep.subr.mxu0 0.0
    %145 = vmatpush1.msra.mxu0 0.0
    %146 = vmatprep.subr.mxu0 0.0
    %147 = vmatpush1.msra.mxu0 0.0
    %148 = vmatprep.subr.mxu0 0.0
    %149 = vmatpush1.msra.mxu0 0.0
    %150 = vmatprep.subr.mxu0 0.0
    %151 = vmatpush1.msra.mxu0 0.0
    %152 = vmatprep.subr.mxu0 0.0
    %153 = vmatpush1.msra.mxu0 0.0
    %154 = vmatprep.subr.mxu0 0.0
    %155 = vmatpush1.msra.mxu0 0.0
    %156 = vmatprep.subr.mxu0 0.0
    %157 = vmatpush1.msra.mxu0 0.0
    %158 = vmatprep.subr.mxu0 0.0
    %159 = vmatpush1.msra.mxu0 0.0
    %160 = vmatprep.subr.mxu0 0.0
    %161 = vmatpush1.msra.mxu0 0.0
    %162 = vmatprep.mubr.f32.mxu0 0.0
    %163 = vmatmul.mubr.f32.gmra.mrb[0].mxu0 %v74
    %v164 = vpop.f32.mrb[0].mxu0
    %v165 = vadd.f32 %v97, %v164
    %v166 = vpop.f32.mrb[0].mxu0
    %167 = vdwg.mxu0
    %v168 = vmax.f32 %v165, 0.0
    %v169 = vld [vmem:[#allocation7] sm:$0xff]
    %v170 = vld [vmem:[#allocation7 + $0x8] sm:$0xff]
    %v171 = vld [vmem:[#allocation7 + $0x10] sm:$0xff]
    %v172 = vld [vmem:[#allocation7 + $0x18] sm:$0xff]
    %v173 = vld [vmem:[#allocation7 + $0x20] sm:$0xff]
    %v174 = vld [vmem:[#allocation7 + $0x28] sm:$0xff]
    %v175 = vld [vmem:[#allocation7 + $0x30] sm:$0xff]
    %v176 = vld [vmem:[#allocation7 + $0x38] sm:$0xff]
    %v177 = vld [vmem:[#allocation7 + $0x40] sm:$0xff]
    %v178 = vld [vmem:[#allocation7 + $0x48] sm:$0xff]
    %v179 = vld [vmem:[#allocation7 + $0x50] sm:$0xff]
    %v180 = vld [vmem:[#allocation7 + $0x58] sm:$0xff]
    %v181 = vld [vmem:[#allocation7 + $0x60] sm:$0xff]
    %v182 = vld [vmem:[#allocation7 + $0x68] sm:$0xff]
    %v183 = vld [vmem:[#allocation7 + $0x70] sm:$0xff]
    %v184 = vld [vmem:[#allocation7 + $0x78] sm:$0xff]
    %v185 = vlaneseq
    %v186 = vshrl.u32 %v185, 7
    %v187 = vsub.s32 0, %v186
    %v188 = vrot.slane %v76, %v187
    %189 = vmatprep.subr.mxu0 0.0
    %190 = vmatpush1.msra.mxu0 %v169
    %191 = vmatprep.subr.mxu0 0.0
    %192 = vmatpush1.msra.mxu0 %v170
    %193 = vmatprep.subr.mxu0 0.0
    %194 = vmatpush1.msra.mxu0 %v171
    %195 = vmatprep.subr.mxu0 0.0
    %196 = vmatpush1.msra.mxu0 %v172
    %197 = vmatprep.subr.mxu0 0.0
    %198 = vmatpush1.msra.mxu0 %v173
    %199 = vmatprep.subr.mxu0 0.0
    %200 = vmatpush1.msra.mxu0 %v174
    %201 = vmatprep.subr.mxu0 0.0
    %202 = vmatpush1.msra.mxu0 %v175
    %203 = vmatprep.subr.mxu0 0.0
    %204 = vmatpush1.msra.mxu0 %v176
    %205 = vmatprep.subr.mxu0 0.0
    %206 = vmatpush1.msra.mxu0 %v177
    %207 = vmatprep.subr.mxu0 0.0
    %208 = vmatpush1.msra.mxu0 %v178
    %209 = vmatprep.subr.mxu0 0.0
    %210 = vmatpush1.msra.mxu0 %v179
    %211 = vmatprep.subr.mxu0 0.0
    %212 = vmatpush1.msra.mxu0 %v180
    %213 = vmatprep.subr.mxu0 0.0
    %214 = vmatpush1.msra.mxu0 %v181
    %215 = vmatprep.subr.mxu0 0.0
    %216 = vmatpush1.msra.mxu0 %v182
    %217 = vmatprep.subr.mxu0 0.0
    %218 = vmatpush1.msra.mxu0 %v183
    %219 = vmatprep.subr.mxu0 0.0
    %220 = vmatpush1.msra.mxu0 %v184
    %221 = vmatprep.subr.mxu0 0.0
    %222 = vmatpush1.msra.mxu0 0.0
    %223 = vmatprep.subr.mxu0 0.0
    %224 = vmatpush1.msra.mxu0 0.0
    %225 = vmatprep.subr.mxu0 0.0
    %226 = vmatpush1.msra.mxu0 0.0
    %227 = vmatprep.subr.mxu0 0.0
    %228 = vmatpush1.msra.mxu0 0.0
    %229 = vmatprep.subr.mxu0 0.0
    %230 = vmatpush1.msra.mxu0 0.0
    %231 = vmatprep.subr.mxu0 0.0
    %232 = vmatpush1.msra.mxu0 0.0
    %233 = vmatprep.subr.mxu0 0.0
    %234 = vmatpush1.msra.mxu0 0.0
    %235 = vmatprep.subr.mxu0 0.0
    %236 = vmatpush1.msra.mxu0 0.0
    %237 = vmatprep.subr.mxu0 0.0
    %238 = vmatpush1.msra.mxu0 0.0
    %239 = vmatprep.subr.mxu0 0.0
    %240 = vmatpush1.msra.mxu0 0.0
    %241 = vmatprep.subr.mxu0 0.0
    %242 = vmatpush1.msra.mxu0 0.0
    %243 = vmatprep.subr.mxu0 0.0
    %244 = vmatpush1.msra.mxu0 0.0
    %245 = vmatprep.subr.mxu0 0.0
    %246 = vmatpush1.msra.mxu0 0.0
    %247 = vmatprep.subr.mxu0 0.0
    %248 = vmatpush1.msra.mxu0 0.0
    %249 = vmatprep.subr.mxu0 0.0
    %250 = vmatpush1.msra.mxu0 0.0
    %251 = vmatprep.subr.mxu0 0.0
    %252 = vmatpush1.msra.mxu0 0.0
    %253 = vmatprep.mubr.f32.mxu0 0.0
    %254 = vmatmul.mubr.f32.gmra.mrb[0].mxu0 %v168
    %v255 = vpop.f32.mrb[0].mxu0
    %v256 = vadd.f32 %v188, %v255
    %v257 = vpop.f32.mrb[0].mxu0
    %258 = vdwg.mxu0
    %v259 = vmax.f32 %v256, 0.0
    %v260 = vld [vmem:[#allocation8] sm:$0xff]
    %v261 = vld [vmem:[#allocation8 + $0x8] sm:$0xff]
    %v262 = vld [vmem:[#allocation8 + $0x10] sm:$0xff]
    %v263 = vld [vmem:[#allocation8 + $0x18] sm:$0xff]
    %v264 = vld [vmem:[#allocation8 + $0x20] sm:$0xff]
    %v265 = vld [vmem:[#allocation8 + $0x28] sm:$0xff]
    %v266 = vld [vmem:[#allocation8 + $0x30] sm:$0xff]
    %v267 = vld [vmem:[#allocation8 + $0x38] sm:$0xff]
    %v268 = vld [vmem:[#allocation8 + $0x40] sm:$0xff]
    %v269 = vld [vmem:[#allocation8 + $0x48] sm:$0xff]
    %v270 = vld [vmem:[#allocation8 + $0x50] sm:$0xff]
    %v271 = vld [vmem:[#allocation8 + $0x58] sm:$0xff]
    %v272 = vld [vmem:[#allocation8 + $0x60] sm:$0xff]
    %v273 = vld [vmem:[#allocation8 + $0x68] sm:$0xff]
    %v274 = vld [vmem:[#allocation8 + $0x70] sm:$0xff]
    %v275 = vld [vmem:[#allocation8 + $0x78] sm:$0xff]
    %v276 = vlaneseq
    %v277 = vshrl.u32 %v276, 7
    %v278 = vsub.s32 0, %v277
    %v279 = vrot.slane %v77, %v278
    %280 = vmatprep.subr.mxu0 0.0
    %281 = vmatpush1.msra.mxu0 %v260
    %282 = vmatprep.subr.mxu0 0.0
    %283 = vmatpush1.msra.mxu0 %v261
    %284 = vmatprep.subr.mxu0 0.0
    %285 = vmatpush1.msra.mxu0 %v262
    %286 = vmatprep.subr.mxu0 0.0
    %287 = vmatpush1.msra.mxu0 %v263
    %288 = vmatprep.subr.mxu0 0.0
    %289 = vmatpush1.msra.mxu0 %v264
    %290 = vmatprep.subr.mxu0 0.0
    %291 = vmatpush1.msra.mxu0 %v265
    %292 = vmatprep.subr.mxu0 0.0
    %293 = vmatpush1.msra.mxu0 %v266
    %294 = vmatprep.subr.mxu0 0.0
    %295 = vmatpush1.msra.mxu0 %v267
    %296 = vmatprep.subr.mxu0 0.0
    %297 = vmatpush1.msra.mxu0 %v268
    %298 = vmatprep.subr.mxu0 0.0
    %299 = vmatpush1.msra.mxu0 %v269
    %300 = vmatprep.subr.mxu0 0.0
    %301 = vmatpush1.msra.mxu0 %v270
    %302 = vmatprep.subr.mxu0 0.0
    %303 = vmatpush1.msra.mxu0 %v271
    %304 = vmatprep.subr.mxu0 0.0
    %305 = vmatpush1.msra.mxu0 %v272
    %306 = vmatprep.subr.mxu0 0.0
    %307 = vmatpush1.msra.mxu0 %v273
    %308 = vmatprep.subr.mxu0 0.0
    %309 = vmatpush1.msra.mxu0 %v274
    %310 = vmatprep.subr.mxu0 0.0
    %311 = vmatpush1.msra.mxu0 %v275
    %312 = vmatprep.subr.mxu0 0.0
    %313 = vmatpush1.msra.mxu0 0.0
    %314 = vmatprep.subr.mxu0 0.0
    %315 = vmatpush1.msra.mxu0 0.0
    %316 = vmatprep.subr.mxu0 0.0
    %317 = vmatpush1.msra.mxu0 0.0
    %318 = vmatprep.subr.mxu0 0.0
    %319 = vmatpush1.msra.mxu0 0.0
    %320 = vmatprep.subr.mxu0 0.0
    %321 = vmatpush1.msra.mxu0 0.0
    %322 = vmatprep.subr.mxu0 0.0
    %323 = vmatpush1.msra.mxu0 0.0
    %324 = vmatprep.subr.mxu0 0.0
    %325 = vmatpush1.msra.mxu0 0.0
    %326 = vmatprep.subr.mxu0 0.0
    %327 = vmatpush1.msra.mxu0 0.0
    %328 = vmatprep.subr.mxu0 0.0
    %329 = vmatpush1.msra.mxu0 0.0
    %330 = vmatprep.subr.mxu0 0.0
    %331 = vmatpush1.msra.mxu0 0.0
    %332 = vmatprep.subr.mxu0 0.0
    %333 = vmatpush1.msra.mxu0 0.0
    %334 = vmatprep.subr.mxu0 0.0
    %335 = vmatpush1.msra.mxu0 0.0
    %336 = vmatprep.subr.mxu0 0.0
    %337 = vmatpush1.msra.mxu0 0.0
    %338 = vmatprep.subr.mxu0 0.0
    %339 = vmatpush1.msra.mxu0 0.0
    %340 = vmatprep.subr.mxu0 0.0
    %341 = vmatpush1.msra.mxu0 0.0
    %342 = vmatprep.subr.mxu0 0.0
    %343 = vmatpush1.msra.mxu0 0.0
    %344 = vmatprep.mubr.f32.mxu0 0.0
    %345 = vmatmul.mubr.f32.gmra.mrb[0].mxu0 %v259
    %v346 = vpop.f32.mrb[0].mxu0
    %v347 = vadd.f32 %v279, %v346
    %v348 = vpop.f32.mrb[0].mxu0
    %349 = vdwg.mxu0
    %v350 = vadd.f32 %v347, %v74
    %v351 = vmax.f32 %v350, 0.0
    %352 = vst [vmem:[#allocation10] sm:$0xff] %v351
    // Predicated region
    $region38: #{tpu_custom_call.1} parent=1 // pred_check
      _
    $region39: #{tpu_custom_call.1} parent=1 // pred_check_branch
      %354 = sbr.rel (0) target = $region41
    $region40: #{tpu_custom_call.1} parent=1 // pred_region
      %s356 = ssub.s32 128, 128
      %357 = vsyncadd [#allocation4], %s356
      %s359 = sshll.u32 [#allocation10], 4
      %s360 = int_to_ptr.vmem [resolvable:$true] %s359
      %362 = dma.vmem_to_hbm [thread:$0]  %s360, 128, %s5, [#allocation4]
    $region41: #{tpu_custom_call.1} parent=1 // pred_fallthru
      _
    // Predicated region
    $region42: #{tpu_custom_call.1} parent=1 // pred_check
      _
    $region43: #{tpu_custom_call.1} parent=1 // pred_check_branch
      %364 = sbr.rel (0) target = $region45
    $region44: #{tpu_custom_call.1} parent=1 // pred_region
      %365 = dma.done [#allocation4], 128
    $region45: #{tpu_custom_call.1} parent=1 // pred_fallthru
      _
    %366 = vsyncpa [#allocation3], 1
    %367 = vsyncpa [#allocation6], 1
    %368 = vsyncpa [#allocation9], 1
    %369 = vsyncpa [#allocation4], 1

</llo_original>
